<compile_context>
chip_gen: v6e
topology: v6e:2x2x1
jax: 0.10.0
libtpu: 0.0.40
codegen_flags: <defaults>
</compile_context>

<pallas_src>
import functools
import math

import jax
import jax.numpy as jnp
from jax.experimental import pallas as pl
from jax.experimental.pallas import tpu as pltpu

COMPRESSION_RATIO = 4.0   # CONFIG.model.layer2_config.compression_ratio stand-in
LN_EPS = 1e-5             # nn.LayerNorm default


# ---------------------------------------------------------------------------
# Small helpers
# ---------------------------------------------------------------------------
def _round_up(v, m):
    return -(-v // m) * m


def _has_bf16_vector_units():
    """bf16 VPU/EUP exists on v6e/v7x; v5e and older are f32-only on the VPU."""
    try:
        kind = jax.devices()[0].device_kind.lower()
    except Exception:
        return False
    return not any(tag in kind for tag in ("v2", "v3", "v4", "v5"))


def _physical_vmem_bytes():
    try:
        return int(pltpu.get_tpu_info().vmem_capacity_bytes)
    except Exception:
        return 64 << 20   # conservative fallback: v7x per-TensorCore VMEM


# ---------------------------------------------------------------------------
# Fused kernel: one row-tile per grid step; all four Linear layers plus the two
# LayerNorm/GELU epilogues computed with VMEM-resident intermediates.
# ---------------------------------------------------------------------------
def _layer2_fused_kernel(x_ref, w1_ref, w2_ref, w3_ref, w4_ref,
                         pv_ref, b2_ref, b4_ref,
                         comp_ref, decomp_ref, *, bf16_epilogue):
    ep = jnp.bfloat16 if bf16_epilogue else jnp.float32
    pv = pv_ref[...]                                   # (6, half) f32: b1,g1,be1,b3,g3,be3

    def ln_gelu(y_f32, g, b):
        # Single-pass LayerNorm statistics (f32): mean and E[y^2] together.
        inv_d = 1.0 / y_f32.shape[-1]
        mu = jnp.sum(y_f32, axis=-1, keepdims=True) * inv_d
        ex2 = jnp.sum(y_f32 * y_f32, axis=-1, keepdims=True) * inv_d
        var = jnp.maximum(ex2 - mu * mu, 0.0)
        yn = (y_f32 - mu) * jax.lax.rsqrt(var + LN_EPS)
        # Affine + GELU epilogue in bf16 on v6e/v7x (half the VALU bundles),
        # f32 on v5e (no bf16 VPU/EUP).
        h = yn.astype(ep) * g.astype(ep) + b.astype(ep)
        h = jax.nn.gelu(h, approximate=True)           # tanh -> EUP slot
        return h.astype(jnp.bfloat16)                  # MXU operand for next layer

    x = x_ref[...].astype(jnp.bfloat16)

    # compress: Linear -> LayerNorm -> GELU -> Linear
    y1 = jnp.dot(x, w1_ref[...], preferred_element_type=jnp.float32) + pv[0:1]
    h1 = ln_gelu(y1, pv[1:2], pv[2:3])
    comp = jnp.dot(h1, w2_ref[...], preferred_element_type=jnp.float32) + b2_ref[...]
    comp_ref[...] = comp.astype(comp_ref.dtype)

    # decompress: Linear -> LayerNorm -> GELU -> Linear (consumes f32 comp)
    y2 = jnp.dot(comp.astype(jnp.bfloat16), w3_ref[...],
                 preferred_element_type=jnp.float32) + pv[3:4]
    h2 = ln_gelu(y2, pv[4:5], pv[5:6])
    decomp_ref[...] = (jnp.dot(h2, w4_ref[...], preferred_element_type=jnp.float32)
                       + b4_ref[...]).astype(decomp_ref.dtype)


# ---------------------------------------------------------------------------
# Wrapper
# ---------------------------------------------------------------------------
def layer2_processor_forward(x, p, *, row_block=512, bf16_epilogue=None,
                             out_dtype=jnp.float32):
    """x: [N, hidden_dim] -> (compressed [N, c_dim], decompressed [N, hidden_dim]).

    out_dtype=jnp.bfloat16 halves the store-side HBM traffic if downstream
    consumers accept it (default f32 to match the torch module).
    """
    n, hd = x.shape
    half = p["w1"].shape[1]
    c_dim = p["w2"].shape[1]
    if bf16_epilogue is None:
        bf16_epilogue = _has_bf16_vector_units()

    # --- VMEM budgeting ------------------------------------------------------
    physical_vmem = _physical_vmem_bytes()
    weight_bytes = sum(int(p[k].size) * p[k].dtype.itemsize
                       for k in ("w1", "w2", "w3", "w4"))
    param_bytes = (6 * half + c_dim + hd) * 4
    # double-buffered f32 in/out tiles + intermediate headroom, per row
    row_bytes = 2 * 4 * (hd + c_dim + hd) + 4 * (3 * half + c_dim + hd)

    budget = int(0.7 * physical_vmem)
    # budget conservatively for double-buffered weights (Buffered(1) is
    # requested below, but the fallback path keeps two buffers)
    free_for_rows = max(budget - 2 * weight_bytes - param_bytes, 0)
    tile_cap_vmem = max(8, (free_for_rows // row_bytes) // 8 * 8)
    # TODO(synk): for hd >= 4096 on v7x (64 MiB/TC VMEM) split w1/w4 along their
    # output dim with an extra "arbitrary" grid axis instead of keeping all four
    # weights fully resident.
    # TODO(synk): if c_dim is not a multiple of 128 at production sizes, pad
    # c_dim to 128 lanes at init (downstream contract permitting) to avoid
    # masked partial stores on the compressed output.

    if n <= 8:
        tile = n                      # full-array block (exempt from (8,128) rule)
    else:
        # cap so grid >= 2: keeps v7x's second TensorCore busy for mid-size n
        megacore_cap = _round_up(-(-n // 2), 8)
        tile = max(8, min(row_block, tile_cap_vmem, megacore_cap))
    grid = (pl.cdiv(n, tile),)

    vmem_need = 2 * weight_bytes + param_bytes + tile * row_bytes + (4 << 20)
    vmem_limit = int(min(0.9 * physical_vmem, max(vmem_need, 32 << 20)))

    # --- specs / call ----------------------------------------------------------
    row_in = pl.BlockSpec((tile, hd), lambda i: (i, 0))
    operands = (x, p["w1"], p["w2"], p["w3"], p["w4"], p["pv"], p["b2"], p["b4"])

    def _param_spec(a, mode):
        if mode is None:
            return pl.BlockSpec(a.shape, lambda i: (0, 0))
        return pl.BlockSpec(a.shape, lambda i: (0, 0), pipeline_mode=mode)

    def _build(param_mode):
        return pl.pallas_call(
            functools.partial(_layer2_fused_kernel, bf16_epilogue=bf16_epilogue),
            grid=grid,
            in_specs=[row_in] + [_param_spec(a, param_mode) for a in operands[1:]],
            out_specs=(pl.BlockSpec((tile, c_dim), lambda i: (i, 0)),
                       pl.BlockSpec((tile, hd), lambda i: (i, 0))),
            out_shape=(jax.ShapeDtypeStruct((n, c_dim), out_dtype),
                       jax.ShapeDtypeStruct((n, hd), out_dtype)),
            compiler_params=pltpu.CompilerParams(
                dimension_semantics=("parallel",),
                vmem_limit_bytes=vmem_limit),
        )

    try:
        # Grid-invariant parameters: request single buffering (no re-fetch).
        return _build(pl.Buffered(1))(*operands)
    except Exception:
        # Fallback for Pallas versions without single-buffer pipeline_mode.
        return _build(None)(*operands)


# ---------------------------------------------------------------------------
# Parameter init (mirrors nn.Linear / nn.LayerNorm defaults). Weights are
# pre-transposed to [Din, Dout] and pre-cast to bf16 once, outside the hot path;
# the six half-width bias/LN vectors are packed into one (6, half) array.
# ---------------------------------------------------------------------------
def init_layer2_params(key, hidden_dim, compression_ratio=COMPRESSION_RATIO):
    half = hidden_dim // 2
    c_dim = int(hidden_dim / compression_ratio)
    ks = jax.random.split(key, 4)

    def lin(k, din, dout):
        kw, kb = jax.random.split(k)
        lim = 1.0 / math.sqrt(din)
        w = jax.random.uniform(kw, (dout, din), jnp.float32, -lim, lim)
        b = jax.random.uniform(kb, (dout,), jnp.float32, -lim, lim)
        return w.T.astype(jnp.bfloat16), b   # [Din, Dout], bf16 MXU operand

    w1, b1 = lin(ks[0], hidden_dim, half)
    w2, b2 = lin(ks[1], half, c_dim)
    w3, b3 = lin(ks[2], c_dim, half)
    w4, b4 = lin(ks[3], half, hidden_dim)

    ones = jnp.ones((half,), jnp.float32)
    zeros = jnp.zeros((half,), jnp.float32)
    return {
        "w1": w1, "w2": w2, "w3": w3, "w4": w4,
        # packed half-width params: [b1, ln1_g, ln1_b, b3, ln2_g, ln2_b]
        "pv": jnp.stack([b1, ones, zeros, b3, ones, zeros]),
        "b2": b2.reshape(1, -1),
        "b4": b4.reshape(1, -1),
    }


# ---------------------------------------------------------------------------
# Pure-JAX reference with the same bf16-weight / tanh-GELU math (self-consistent
# cross-check; deviation from exact-f32 torch semantics is bf16 matmul inputs
# and tanh-approx GELU, both inside the 1e-2 tolerance at these scales).
# ---------------------------------------------------------------------------
def _reference_forward(x, p, *, bf16_epilogue):
    ep = jnp.bfloat16 if bf16_epilogue else jnp.float32
    pv = p["pv"]

    def mm(a, w):
        return jnp.dot(a.astype(jnp.bfloat16), w, preferred_element_type=jnp.float32)

    def ln_gelu(y, g, b):
        mu = jnp.mean(y, axis=-1, keepdims=True)
        var = jnp.maximum(jnp.mean(y * y, axis=-1, keepdims=True) - mu * mu, 0.0)
        yn = (y - mu) * jax.lax.rsqrt(var + LN_EPS)
        h = yn.astype(ep) * g.astype(ep) + b.astype(ep)
        return jax.nn.gelu(h, approximate=True)

    h = ln_gelu(mm(x, p["w1"]) + pv[0:1], pv[1:2], pv[2:3])
    comp = mm(h, p["w2"]) + p["b2"]
    h = ln_gelu(mm(comp, p["w3"]) + pv[3:4], pv[4:5], pv[5:6])
    decomp = mm(h, p["w4"]) + p["b4"]
    return comp, decomp


# ---------------------------------------------------------------------------
if __name__ == "__main__":
    hidden_dim = 32
    n_rows = 8

    root = jax.random.PRNGKey(0)
    k_params, k_x = jax.random.split(root)

    params = init_layer2_params(k_params, hidden_dim)
    x = jax.random.normal(k_x, (n_rows, hidden_dim), jnp.float32)

    bf16_ep = _has_bf16_vector_units()
    compressed, decompressed = layer2_processor_forward(x, params, bf16_epilogue=bf16_ep)
    compressed, decompressed = jax.block_until_ready((compressed, decompressed))

    c_dim = int(hidden_dim / COMPRESSION_RATIO)
    assert compressed.shape == (n_rows, c_dim), compressed.shape
    assert decompressed.shape == (n_rows, hidden_dim), decompressed.shape
    assert bool(jnp.all(jnp.isfinite(compressed)))
    assert bool(jnp.all(jnp.isfinite(decompressed)))

    ref_c, ref_d = _reference_forward(x, params, bf16_epilogue=bf16_ep)
    assert bool(jnp.allclose(compressed, ref_c, rtol=1e-2, atol=1e-2)), \
        float(jnp.max(jnp.abs(compressed - ref_c)))
    assert bool(jnp.allclose(decompressed, ref_d, rtol=1e-2, atol=1e-2)), \
        float(jnp.max(jnp.abs(decompressed - ref_d)))

    print("KERNEL_OK")
</pallas_src>

<mosaic_0001>
module attributes {stable_mosaic.version = 11 : i64} {
  func.func @_layer2_fused_kernel(%arg0: i32, %arg1: memref<8x32xf32, #tpu.memory_space<vmem>>, %arg2: memref<32x16xbf16, #tpu.memory_space<vmem>>, %arg3: memref<16x8xbf16, #tpu.memory_space<vmem>>, %arg4: memref<8x16xbf16, #tpu.memory_space<vmem>>, %arg5: memref<16x32xbf16, #tpu.memory_space<vmem>>, %arg6: memref<6x16xf32, #tpu.memory_space<vmem>>, %arg7: memref<1x8xf32, #tpu.memory_space<vmem>>, %arg8: memref<1x32xf32, #tpu.memory_space<vmem>>, %arg9: memref<8x8xf32, #tpu.memory_space<vmem>>, %arg10: memref<8x32xf32, #tpu.memory_space<vmem>>) attributes {dimension_semantics = [#tpu.dimension_semantics<parallel>], iteration_bounds = array<i64: 1>, scalar_prefetch = 0 : i64, scratch_operands = 0 : i64, tpu.core_type = #tpu.core_type<tc>, window_params = [{transform_indices = @transform_0, window_bounds = array<i64: 8, 32>}, {pipeline_mode = #tpu.pipeline_mode<synchronous>, transform_indices = @transform_1, window_bounds = array<i64: 32, 16>}, {pipeline_mode = #tpu.pipeline_mode<synchronous>, transform_indices = @transform_2, window_bounds = array<i64: 16, 8>}, {pipeline_mode = #tpu.pipeline_mode<synchronous>, transform_indices = @transform_3, window_bounds = array<i64: 8, 16>}, {pipeline_mode = #tpu.pipeline_mode<synchronous>, transform_indices = @transform_4, window_bounds = array<i64: 16, 32>}, {pipeline_mode = #tpu.pipeline_mode<synchronous>, transform_indices = @transform_5, window_bounds = array<i64: 6, 16>}, {pipeline_mode = #tpu.pipeline_mode<synchronous>, transform_indices = @transform_6, window_bounds = array<i64: 1, 8>}, {pipeline_mode = #tpu.pipeline_mode<synchronous>, transform_indices = @transform_7, window_bounds = array<i64: 1, 32>}, {transform_indices = @transform_8, window_bounds = array<i64: 8, 8>}, {transform_indices = @transform_9, window_bounds = array<i64: 8, 32>}]} {
    %c0 = arith.constant 0 : index
    %c0_0 = arith.constant 0 : index
    %0 = vector.load %arg6[%c0, %c0_0] : memref<6x16xf32, #tpu.memory_space<vmem>>, vector<6x16xf32>
    %c0_1 = arith.constant 0 : index
    %c0_2 = arith.constant 0 : index
    %1 = vector.load %arg1[%c0_1, %c0_2] : memref<8x32xf32, #tpu.memory_space<vmem>>, vector<8x32xf32>
    %2 = arith.truncf %1 : vector<8x32xf32> to vector<8x32xbf16>
    %c0_3 = arith.constant 0 : index
    %c0_4 = arith.constant 0 : index
    %3 = vector.load %arg2[%c0_3, %c0_4] : memref<32x16xbf16, #tpu.memory_space<vmem>>, vector<32x16xbf16>
    %cst = arith.constant dense<0.000000e+00> : vector<8x16xf32>
    %4 = tpu.matmul %2, %3, %cst {dimension_numbers = #tpu.dot_dimension_numbers<[1], [0], [0], [1], [0, 0, 1, 1], [], []>} : vector<8x32xbf16>, vector<32x16xbf16>, vector<8x16xf32> -> vector<8x16xf32>
    %5 = vector.extract_strided_slice %0 {offsets = [0, 0], sizes = [1, 16], strides = [1, 1]} : vector<6x16xf32> to vector<1x16xf32>
    %6 = vector.broadcast %5 : vector<1x16xf32> to vector<8x16xf32>
    %7 = arith.addf %4, %6 : vector<8x16xf32>
    %8 = vector.extract_strided_slice %0 {offsets = [1, 0], sizes = [1, 16], strides = [1, 1]} : vector<6x16xf32> to vector<1x16xf32>
    %9 = vector.extract_strided_slice %0 {offsets = [2, 0], sizes = [1, 16], strides = [1, 1]} : vector<6x16xf32> to vector<1x16xf32>
    %cst_5 = arith.constant dense<0.000000e+00> : vector<8xf32>
    %10 = vector.multi_reduction <add>, %7, %cst_5 [1] : vector<8x16xf32> to vector<8xf32>
    %11 = vector.shape_cast %10 : vector<8xf32> to vector<8x1xf32>
    %cst_6 = arith.constant 6.250000e-02 : f32
    %12 = vector.broadcast %cst_6 : f32 to vector<8x1xf32>
    %13 = arith.mulf %11, %12 : vector<8x1xf32>
    %14 = arith.mulf %7, %7 : vector<8x16xf32>
    %cst_7 = arith.constant dense<0.000000e+00> : vector<8xf32>
    %15 = vector.multi_reduction <add>, %14, %cst_7 [1] : vector<8x16xf32> to vector<8xf32>
    %16 = vector.shape_cast %15 : vector<8xf32> to vector<8x1xf32>
    %cst_8 = arith.constant 6.250000e-02 : f32
    %17 = vector.broadcast %cst_8 : f32 to vector<8x1xf32>
    %18 = arith.mulf %16, %17 : vector<8x1xf32>
    %19 = arith.mulf %13, %13 : vector<8x1xf32>
    %20 = arith.subf %18, %19 : vector<8x1xf32>
    %cst_9 = arith.constant 0.000000e+00 : f32
    %21 = vector.broadcast %cst_9 : f32 to vector<8x1xf32>
    %22 = arith.maximumf %20, %21 : vector<8x1xf32>
    %23 = vector.broadcast %13 : vector<8x1xf32> to vector<8x16xf32>
    %24 = arith.subf %7, %23 : vector<8x16xf32>
    %cst_10 = arith.constant 9.99999974E-6 : f32
    %25 = vector.broadcast %cst_10 : f32 to vector<8x1xf32>
    %26 = arith.addf %22, %25 : vector<8x1xf32>
    %27 = math.rsqrt %26 : vector<8x1xf32>
    %28 = vector.broadcast %27 : vector<8x1xf32> to vector<8x16xf32>
    %29 = arith.mulf %24, %28 : vector<8x16xf32>
    %30 = arith.truncf %29 : vector<8x16xf32> to vector<8x16xbf16>
    %31 = arith.truncf %8 : vector<1x16xf32> to vector<1x16xbf16>
    %32 = vector.broadcast %31 : vector<1x16xbf16> to vector<8x16xbf16>
    %33 = arith.mulf %30, %32 : vector<8x16xbf16>
    %34 = arith.truncf %9 : vector<1x16xf32> to vector<1x16xbf16>
    %35 = vector.broadcast %34 : vector<1x16xbf16> to vector<8x16xbf16>
    %36 = arith.addf %33, %35 : vector<8x16xbf16>
    %37 = arith.mulf %36, %36 : vector<8x16xbf16>
    %38 = arith.mulf %36, %37 : vector<8x16xbf16>
    %cst_11 = arith.constant 4.467770e-02 : bf16
    %39 = vector.broadcast %cst_11 : bf16 to vector<8x16xbf16>
    %40 = arith.mulf %39, %38 : vector<8x16xbf16>
    %41 = arith.addf %36, %40 : vector<8x16xbf16>
    %cst_12 = arith.constant 7.968750e-01 : bf16
    %42 = vector.broadcast %cst_12 : bf16 to vector<8x16xbf16>
    %43 = arith.mulf %42, %41 : vector<8x16xbf16>
    %44 = math.tanh %43 : vector<8x16xbf16>
    %cst_13 = arith.constant 1.000000e+00 : bf16
    %45 = vector.broadcast %cst_13 : bf16 to vector<8x16xbf16>
    %46 = arith.addf %45, %44 : vector<8x16xbf16>
    %cst_14 = arith.constant 5.000000e-01 : bf16
    %47 = vector.broadcast %cst_14 : bf16 to vector<8x16xbf16>
    %48 = arith.mulf %47, %46 : vector<8x16xbf16>
    %49 = arith.mulf %36, %48 : vector<8x16xbf16>
    %c0_15 = arith.constant 0 : index
    %c0_16 = arith.constant 0 : index
    %50 = vector.load %arg3[%c0_15, %c0_16] : memref<16x8xbf16, #tpu.memory_space<vmem>>, vector<16x8xbf16>
    %cst_17 = arith.constant dense<0.000000e+00> : vector<8x8xf32>
    %51 = tpu.matmul %49, %50, %cst_17 {dimension_numbers = #tpu.dot_dimension_numbers<[1], [0], [0], [1], [0, 0, 1, 1], [], []>} : vector<8x16xbf16>, vector<16x8xbf16>, vector<8x8xf32> -> vector<8x8xf32>
    %c0_18 = arith.constant 0 : index
    %c0_19 = arith.constant 0 : index
    %52 = vector.load %arg7[%c0_18, %c0_19] : memref<1x8xf32, #tpu.memory_space<vmem>>, vector<1x8xf32>
    %53 = vector.broadcast %52 : vector<1x8xf32> to vector<8x8xf32>
    %54 = arith.addf %51, %53 : vector<8x8xf32>
    %c0_20 = arith.constant 0 : index
    %c0_21 = arith.constant 0 : index
    %55 = vector.load %arg9[%c0_20, %c0_21] : memref<8x8xf32, #tpu.memory_space<vmem>>, vector<8x8xf32>
    tpu.vector_store %arg9[%c0_20, %c0_21], %54 {strides = array<i32>} : memref<8x8xf32, #tpu.memory_space<vmem>>, vector<8x8xf32>,
    %56 = arith.truncf %54 : vector<8x8xf32> to vector<8x8xbf16>
    %c0_22 = arith.constant 0 : index
    %c0_23 = arith.constant 0 : index
    %57 = vector.load %arg4[%c0_22, %c0_23] : memref<8x16xbf16, #tpu.memory_space<vmem>>, vector<8x16xbf16>
    %cst_24 = arith.constant dense<0.000000e+00> : vector<8x16xf32>
    %58 = tpu.matmul %56, %57, %cst_24 {dimension_numbers = #tpu.dot_dimension_numbers<[1], [0], [0], [1], [0, 0, 1, 1], [], []>} : vector<8x8xbf16>, vector<8x16xbf16>, vector<8x16xf32> -> vector<8x16xf32>
    %59 = vector.extract_strided_slice %0 {offsets = [3, 0], sizes = [1, 16], strides = [1, 1]} : vector<6x16xf32> to vector<1x16xf32>
    %60 = vector.broadcast %59 : vector<1x16xf32> to vector<8x16xf32>
    %61 = arith.addf %58, %60 : vector<8x16xf32>
    %62 = vector.extract_strided_slice %0 {offsets = [4, 0], sizes = [1, 16], strides = [1, 1]} : vector<6x16xf32> to vector<1x16xf32>
    %63 = vector.extract_strided_slice %0 {offsets = [5, 0], sizes = [1, 16], strides = [1, 1]} : vector<6x16xf32> to vector<1x16xf32>
    %cst_25 = arith.constant dense<0.000000e+00> : vector<8xf32>
    %64 = vector.multi_reduction <add>, %61, %cst_25 [1] : vector<8x16xf32> to vector<8xf32>
    %65 = vector.shape_cast %64 : vector<8xf32> to vector<8x1xf32>
    %cst_26 = arith.constant 6.250000e-02 : f32
    %66 = vector.broadcast %cst_26 : f32 to vector<8x1xf32>
    %67 = arith.mulf %65, %66 : vector<8x1xf32>
    %68 = arith.mulf %61, %61 : vector<8x16xf32>
    %cst_27 = arith.constant dense<0.000000e+00> : vector<8xf32>
    %69 = vector.multi_reduction <add>, %68, %cst_27 [1] : vector<8x16xf32> to vector<8xf32>
    %70 = vector.shape_cast %69 : vector<8xf32> to vector<8x1xf32>
    %cst_28 = arith.constant 6.250000e-02 : f32
    %71 = vector.broadcast %cst_28 : f32 to vector<8x1xf32>
    %72 = arith.mulf %70, %71 : vector<8x1xf32>
    %73 = arith.mulf %67, %67 : vector<8x1xf32>
    %74 = arith.subf %72, %73 : vector<8x1xf32>
    %cst_29 = arith.constant 0.000000e+00 : f32
    %75 = vector.broadcast %cst_29 : f32 to vector<8x1xf32>
    %76 = arith.maximumf %74, %75 : vector<8x1xf32>
    %77 = vector.broadcast %67 : vector<8x1xf32> to vector<8x16xf32>
    %78 = arith.subf %61, %77 : vector<8x16xf32>
    %cst_30 = arith.constant 9.99999974E-6 : f32
    %79 = vector.broadcast %cst_30 : f32 to vector<8x1xf32>
    %80 = arith.addf %76, %79 : vector<8x1xf32>
    %81 = math.rsqrt %80 : vector<8x1xf32>
    %82 = vector.broadcast %81 : vector<8x1xf32> to vector<8x16xf32>
    %83 = arith.mulf %78, %82 : vector<8x16xf32>
    %84 = arith.truncf %83 : vector<8x16xf32> to vector<8x16xbf16>
    %85 = arith.truncf %62 : vector<1x16xf32> to vector<1x16xbf16>
    %86 = vector.broadcast %85 : vector<1x16xbf16> to vector<8x16xbf16>
    %87 = arith.mulf %84, %86 : vector<8x16xbf16>
    %88 = arith.truncf %63 : vector<1x16xf32> to vector<1x16xbf16>
    %89 = vector.broadcast %88 : vector<1x16xbf16> to vector<8x16xbf16>
    %90 = arith.addf %87, %89 : vector<8x16xbf16>
    %91 = arith.mulf %90, %90 : vector<8x16xbf16>
    %92 = arith.mulf %90, %91 : vector<8x16xbf16>
    %cst_31 = arith.constant 4.467770e-02 : bf16
    %93 = vector.broadcast %cst_31 : bf16 to vector<8x16xbf16>
    %94 = arith.mulf %93, %92 : vector<8x16xbf16>
    %95 = arith.addf %90, %94 : vector<8x16xbf16>
    %cst_32 = arith.constant 7.968750e-01 : bf16
    %96 = vector.broadcast %cst_32 : bf16 to vector<8x16xbf16>
    %97 = arith.mulf %96, %95 : vector<8x16xbf16>
    %98 = math.tanh %97 : vector<8x16xbf16>
    %cst_33 = arith.constant 1.000000e+00 : bf16
    %99 = vector.broadcast %cst_33 : bf16 to vector<8x16xbf16>
    %100 = arith.addf %99, %98 : vector<8x16xbf16>
    %cst_34 = arith.constant 5.000000e-01 : bf16
    %101 = vector.broadcast %cst_34 : bf16 to vector<8x16xbf16>
    %102 = arith.mulf %101, %100 : vector<8x16xbf16>
    %103 = arith.mulf %90, %102 : vector<8x16xbf16>
    %c0_35 = arith.constant 0 : index
    %c0_36 = arith.constant 0 : index
    %104 = vector.load %arg5[%c0_35, %c0_36] : memref<16x32xbf16, #tpu.memory_space<vmem>>, vector<16x32xbf16>
    %cst_37 = arith.constant dense<0.000000e+00> : vector<8x32xf32>
    %105 = tpu.matmul %103, %104, %cst_37 {dimension_numbers = #tpu.dot_dimension_numbers<[1], [0], [0], [1], [0, 0, 1, 1], [], []>} : vector<8x16xbf16>, vector<16x32xbf16>, vector<8x32xf32> -> vector<8x32xf32>
    %c0_38 = arith.constant 0 : index
    %c0_39 = arith.constant 0 : index
    %106 = vector.load %arg8[%c0_38, %c0_39] : memref<1x32xf32, #tpu.memory_space<vmem>>, vector<1x32xf32>
    %107 = vector.broadcast %106 : vector<1x32xf32> to vector<8x32xf32>
    %108 = arith.addf %105, %107 : vector<8x32xf32>
    %c0_40 = arith.constant 0 : index
    %c0_41 = arith.constant 0 : index
    %109 = vector.load %arg10[%c0_40, %c0_41] : memref<8x32xf32, #tpu.memory_space<vmem>>, vector<8x32xf32>
    tpu.vector_store %arg10[%c0_40, %c0_41], %108 {strides = array<i32>} : memref<8x32xf32, #tpu.memory_space<vmem>>, vector<8x32xf32>,
    return
  }
  func.func @transform_0(%arg0: i32) -> (i32, i32) {
    %c0_i32 = arith.constant 0 : i32
    %c0_i32_0 = arith.constant 0 : i32
    return %arg0, %c0_i32 : i32, i32
  }
  func.func @transform_1(%arg0: i32) -> (i32, i32) {
    %c0_i32 = arith.constant 0 : i32
    %c0_i32_0 = arith.constant 0 : i32
    %c0_i32_1 = arith.constant 0 : i32
    return %c0_i32, %c0_i32_0 : i32, i32
  }
  func.func @transform_2(%arg0: i32) -> (i32, i32) {
    %c0_i32 = arith.constant 0 : i32
    %c0_i32_0 = arith.constant 0 : i32
    %c0_i32_1 = arith.constant 0 : i32
    return %c0_i32, %c0_i32_0 : i32, i32
  }
  func.func @transform_3(%arg0: i32) -> (i32, i32) {
    %c0_i32 = arith.constant 0 : i32
    %c0_i32_0 = arith.constant 0 : i32
    %c0_i32_1 = arith.constant 0 : i32
    return %c0_i32, %c0_i32_0 : i32, i32
  }
  func.func @transform_4(%arg0: i32) -> (i32, i32) {
    %c0_i32 = arith.constant 0 : i32
    %c0_i32_0 = arith.constant 0 : i32
    %c0_i32_1 = arith.constant 0 : i32
    return %c0_i32, %c0_i32_0 : i32, i32
  }
  func.func @transform_5(%arg0: i32) -> (i32, i32) {
    %c0_i32 = arith.constant 0 : i32
    %c0_i32_0 = arith.constant 0 : i32
    %c0_i32_1 = arith.constant 0 : i32
    return %c0_i32, %c0_i32_0 : i32, i32
  }
  func.func @transform_6(%arg0: i32) -> (i32, i32) {
    %c0_i32 = arith.constant 0 : i32
    %c0_i32_0 = arith.constant 0 : i32
    %c0_i32_1 = arith.constant 0 : i32
    return %c0_i32, %c0_i32_0 : i32, i32
  }
  func.func @transform_7(%arg0: i32) -> (i32, i32) {
    %c0_i32 = arith.constant 0 : i32
    %c0_i32_0 = arith.constant 0 : i32
    %c0_i32_1 = arith.constant 0 : i32
    return %c0_i32, %c0_i32_0 : i32, i32
  }
  func.func @transform_8(%arg0: i32) -> (i32, i32) {
    %c0_i32 = arith.constant 0 : i32
    %c0_i32_0 = arith.constant 0 : i32
    return %arg0, %c0_i32 : i32, i32
  }
  func.func @transform_9(%arg0: i32) -> (i32, i32) {
    %c0_i32 = arith.constant 0 : i32
    %c0_i32_0 = arith.constant 0 : i32
    return %arg0, %c0_i32 : i32, i32
  }
}

module attributes {stable_mosaic.version = 11 : i64} {
  func.func @_layer2_fused_kernel(%arg0: i32, %arg1: memref<8x32xf32, #tpu.memory_space<vmem>>, %arg2: memref<32x16xbf16, #tpu.memory_space<vmem>>, %arg3: memref<16x8xbf16, #tpu.memory_space<vmem>>, %arg4: memref<8x16xbf16, #tpu.memory_space<vmem>>, %arg5: memref<16x32xbf16, #tpu.memory_space<vmem>>, %arg6: memref<6x16xf32, #tpu.memory_space<vmem>>, %arg7: memref<1x8xf32, #tpu.memory_space<vmem>>, %arg8: memref<1x32xf32, #tpu.memory_space<vmem>>, %arg9: memref<8x8xf32, #tpu.memory_space<vmem>>, %arg10: memref<8x32xf32, #tpu.memory_space<vmem>>) attributes {dimension_semantics = [#tpu.dimension_semantics<parallel>], iteration_bounds = array<i64: 1>, scalar_prefetch = 0 : i64, scratch_operands = 0 : i64, tpu.core_type = #tpu.core_type<tc>, window_params = [{transform_indices = @transform_0, window_bounds = array<i64: 8, 32>}, {pipeline_mode = #tpu.pipeline_mode<synchronous>, transform_indices = @transform_1, window_bounds = array<i64: 32, 16>}, {pipeline_mode = #tpu.pipeline_mode<synchronous>, transform_indices = @transform_2, window_bounds = array<i64: 16, 8>}, {pipeline_mode = #tpu.pipeline_mode<synchronous>, transform_indices = @transform_3, window_bounds = array<i64: 8, 16>}, {pipeline_mode = #tpu.pipeline_mode<synchronous>, transform_indices = @transform_4, window_bounds = array<i64: 16, 32>}, {pipeline_mode = #tpu.pipeline_mode<synchronous>, transform_indices = @transform_5, window_bounds = array<i64: 6, 16>}, {pipeline_mode = #tpu.pipeline_mode<synchronous>, transform_indices = @transform_6, window_bounds = array<i64: 1, 8>}, {pipeline_mode = #tpu.pipeline_mode<synchronous>, transform_indices = @transform_7, window_bounds = array<i64: 1, 32>}, {transform_indices = @transform_8, window_bounds = array<i64: 8, 8>}, {transform_indices = @transform_9, window_bounds = array<i64: 8, 32>}]} {
    %c0 = arith.constant 0 : index
    %c0_0 = arith.constant 0 : index
    %0 = vector.load %arg6[%c0, %c0_0] : memref<6x16xf32, #tpu.memory_space<vmem>>, vector<6x16xf32>
    %c0_1 = arith.constant 0 : index
    %c0_2 = arith.constant 0 : index
    %1 = vector.load %arg1[%c0_1, %c0_2] : memref<8x32xf32, #tpu.memory_space<vmem>>, vector<8x32xf32>
    %2 = arith.truncf %1 : vector<8x32xf32> to vector<8x32xbf16>
    %c0_3 = arith.constant 0 : index
    %c0_4 = arith.constant 0 : index
    %3 = vector.load %arg2[%c0_3, %c0_4] : memref<32x16xbf16, #tpu.memory_space<vmem>>, vector<32x16xbf16>
    %cst = arith.constant dense<0.000000e+00> : vector<8x16xf32>
    %4 = tpu.matmul %2, %3, %cst {dimension_numbers = #tpu.dot_dimension_numbers<[1], [0], [0], [1], [0, 0, 1, 1], [], []>} : vector<8x32xbf16>, vector<32x16xbf16>, vector<8x16xf32> -> vector<8x16xf32>
    %5 = vector.extract_strided_slice %0 {offsets = [0, 0], sizes = [1, 16], strides = [1, 1]} : vector<6x16xf32> to vector<1x16xf32>
    %6 = vector.broadcast %5 : vector<1x16xf32> to vector<8x16xf32>
    %7 = arith.addf %4, %6 : vector<8x16xf32>
    %8 = vector.extract_strided_slice %0 {offsets = [1, 0], sizes = [1, 16], strides = [1, 1]} : vector<6x16xf32> to vector<1x16xf32>
    %9 = vector.extract_strided_slice %0 {offsets = [2, 0], sizes = [1, 16], strides = [1, 1]} : vector<6x16xf32> to vector<1x16xf32>
    %cst_5 = arith.constant dense<0.000000e+00> : vector<8xf32>
    %10 = vector.multi_reduction <add>, %7, %cst_5 [1] : vector<8x16xf32> to vector<8xf32>
    %11 = vector.shape_cast %10 : vector<8xf32> to vector<8x1xf32>
    %cst_6 = arith.constant 6.250000e-02 : f32
    %12 = vector.broadcast %cst_6 : f32 to vector<8x1xf32>
    %13 = arith.mulf %11, %12 : vector<8x1xf32>
    %14 = arith.mulf %7, %7 : vector<8x16xf32>
    %cst_7 = arith.constant dense<0.000000e+00> : vector<8xf32>
    %15 = vector.multi_reduction <add>, %14, %cst_7 [1] : vector<8x16xf32> to vector<8xf32>
    %16 = vector.shape_cast %15 : vector<8xf32> to vector<8x1xf32>
    %cst_8 = arith.constant 6.250000e-02 : f32
    %17 = vector.broadcast %cst_8 : f32 to vector<8x1xf32>
    %18 = arith.mulf %16, %17 : vector<8x1xf32>
    %19 = arith.mulf %13, %13 : vector<8x1xf32>
    %20 = arith.subf %18, %19 : vector<8x1xf32>
    %cst_9 = arith.constant 0.000000e+00 : f32
    %21 = vector.broadcast %cst_9 : f32 to vector<8x1xf32>
    %22 = arith.maximumf %20, %21 : vector<8x1xf32>
    %23 = vector.broadcast %13 : vector<8x1xf32> to vector<8x16xf32>
    %24 = arith.subf %7, %23 : vector<8x16xf32>
    %cst_10 = arith.constant 9.99999974E-6 : f32
    %25 = vector.broadcast %cst_10 : f32 to vector<8x1xf32>
    %26 = arith.addf %22, %25 : vector<8x1xf32>
    %27 = math.rsqrt %26 : vector<8x1xf32>
    %28 = vector.broadcast %27 : vector<8x1xf32> to vector<8x16xf32>
    %29 = arith.mulf %24, %28 : vector<8x16xf32>
    %30 = arith.truncf %29 : vector<8x16xf32> to vector<8x16xbf16>
    %31 = arith.truncf %8 : vector<1x16xf32> to vector<1x16xbf16>
    %32 = vector.broadcast %31 : vector<1x16xbf16> to vector<8x16xbf16>
    %33 = arith.mulf %30, %32 : vector<8x16xbf16>
    %34 = arith.truncf %9 : vector<1x16xf32> to vector<1x16xbf16>
    %35 = vector.broadcast %34 : vector<1x16xbf16> to vector<8x16xbf16>
    %36 = arith.addf %33, %35 : vector<8x16xbf16>
    %37 = arith.mulf %36, %36 : vector<8x16xbf16>
    %38 = arith.mulf %36, %37 : vector<8x16xbf16>
    %cst_11 = arith.constant 4.467770e-02 : bf16
    %39 = vector.broadcast %cst_11 : bf16 to vector<8x16xbf16>
    %40 = arith.mulf %39, %38 : vector<8x16xbf16>
    %41 = arith.addf %36, %40 : vector<8x16xbf16>
    %cst_12 = arith.constant 7.968750e-01 : bf16
    %42 = vector.broadcast %cst_12 : bf16 to vector<8x16xbf16>
    %43 = arith.mulf %42, %41 : vector<8x16xbf16>
    %44 = math.tanh %43 : vector<8x16xbf16>
    %cst_13 = arith.constant 1.000000e+00 : bf16
    %45 = vector.broadcast %cst_13 : bf16 to vector<8x16xbf16>
    %46 = arith.addf %45, %44 : vector<8x16xbf16>
    %cst_14 = arith.constant 5.000000e-01 : bf16
    %47 = vector.broadcast %cst_14 : bf16 to vector<8x16xbf16>
    %48 = arith.mulf %47, %46 : vector<8x16xbf16>
    %49 = arith.mulf %36, %48 : vector<8x16xbf16>
    %c0_15 = arith.constant 0 : index
    %c0_16 = arith.constant 0 : index
    %50 = vector.load %arg3[%c0_15, %c0_16] : memref<16x8xbf16, #tpu.memory_space<vmem>>, vector<16x8xbf16>
    %cst_17 = arith.constant dense<0.000000e+00> : vector<8x8xf32>
    %51 = tpu.matmul %49, %50, %cst_17 {dimension_numbers = #tpu.dot_dimension_numbers<[1], [0], [0], [1], [0, 0, 1, 1], [], []>} : vector<8x16xbf16>, vector<16x8xbf16>, vector<8x8xf32> -> vector<8x8xf32>
    %c0_18 = arith.constant 0 : index
    %c0_19 = arith.constant 0 : index
    %52 = vector.load %arg7[%c0_18, %c0_19] : memref<1x8xf32, #tpu.memory_space<vmem>>, vector<1x8xf32>
    %53 = vector.broadcast %52 : vector<1x8xf32> to vector<8x8xf32>
    %54 = arith.addf %51, %53 : vector<8x8xf32>
    %c0_20 = arith.constant 0 : index
    %c0_21 = arith.constant 0 : index
    %55 = vector.load %arg9[%c0_20, %c0_21] : memref<8x8xf32, #tpu.memory_space<vmem>>, vector<8x8xf32>
    tpu.vector_store %arg9[%c0_20, %c0_21], %54 {strides = array<i32>} : memref<8x8xf32, #tpu.memory_space<vmem>>, vector<8x8xf32>,
    %56 = arith.truncf %54 : vector<8x8xf32> to vector<8x8xbf16>
    %c0_22 = arith.constant 0 : index
    %c0_23 = arith.constant 0 : index
    %57 = vector.load %arg4[%c0_22, %c0_23] : memref<8x16xbf16, #tpu.memory_space<vmem>>, vector<8x16xbf16>
    %cst_24 = arith.constant dense<0.000000e+00> : vector<8x16xf32>
    %58 = tpu.matmul %56, %57, %cst_24 {dimension_numbers = #tpu.dot_dimension_numbers<[1], [0], [0], [1], [0, 0, 1, 1], [], []>} : vector<8x8xbf16>, vector<8x16xbf16>, vector<8x16xf32> -> vector<8x16xf32>
    %59 = vector.extract_strided_slice %0 {offsets = [3, 0], sizes = [1, 16], strides = [1, 1]} : vector<6x16xf32> to vector<1x16xf32>
    %60 = vector.broadcast %59 : vector<1x16xf32> to vector<8x16xf32>
    %61 = arith.addf %58, %60 : vector<8x16xf32>
    %62 = vector.extract_strided_slice %0 {offsets = [4, 0], sizes = [1, 16], strides = [1, 1]} : vector<6x16xf32> to vector<1x16xf32>
    %63 = vector.extract_strided_slice %0 {offsets = [5, 0], sizes = [1, 16], strides = [1, 1]} : vector<6x16xf32> to vector<1x16xf32>
    %cst_25 = arith.constant dense<0.000000e+00> : vector<8xf32>
    %64 = vector.multi_reduction <add>, %61, %cst_25 [1] : vector<8x16xf32> to vector<8xf32>
    %65 = vector.shape_cast %64 : vector<8xf32> to vector<8x1xf32>
    %cst_26 = arith.constant 6.250000e-02 : f32
    %66 = vector.broadcast %cst_26 : f32 to vector<8x1xf32>
    %67 = arith.mulf %65, %66 : vector<8x1xf32>
    %68 = arith.mulf %61, %61 : vector<8x16xf32>
    %cst_27 = arith.constant dense<0.000000e+00> : vector<8xf32>
    %69 = vector.multi_reduction <add>, %68, %cst_27 [1] : vector<8x16xf32> to vector<8xf32>
    %70 = vector.shape_cast %69 : vector<8xf32> to vector<8x1xf32>
    %cst_28 = arith.constant 6.250000e-02 : f32
    %71 = vector.broadcast %cst_28 : f32 to vector<8x1xf32>
    %72 = arith.mulf %70, %71 : vector<8x1xf32>
    %73 = arith.mulf %67, %67 : vector<8x1xf32>
    %74 = arith.subf %72, %73 : vector<8x1xf32>
    %cst_29 = arith.constant 0.000000e+00 : f32
    %75 = vector.broadcast %cst_29 : f32 to vector<8x1xf32>
    %76 = arith.maximumf %74, %75 : vector<8x1xf32>
    %77 = vector.broadcast %67 : vector<8x1xf32> to vector<8x16xf32>
    %78 = arith.subf %61, %77 : vector<8x16xf32>
    %cst_30 = arith.constant 9.99999974E-6 : f32
    %79 = vector.broadcast %cst_30 : f32 to vector<8x1xf32>
    %80 = arith.addf %76, %79 : vector<8x1xf32>
    %81 = math.rsqrt %80 : vector<8x1xf32>
    %82 = vector.broadcast %81 : vector<8x1xf32> to vector<8x16xf32>
    %83 = arith.mulf %78, %82 : vector<8x16xf32>
    %84 = arith.truncf %83 : vector<8x16xf32> to vector<8x16xbf16>
    %85 = arith.truncf %62 : vector<1x16xf32> to vector<1x16xbf16>
    %86 = vector.broadcast %85 : vector<1x16xbf16> to vector<8x16xbf16>
    %87 = arith.mulf %84, %86 : vector<8x16xbf16>
    %88 = arith.truncf %63 : vector<1x16xf32> to vector<1x16xbf16>
    %89 = vector.broadcast %88 : vector<1x16xbf16> to vector<8x16xbf16>
    %90 = arith.addf %87, %89 : vector<8x16xbf16>
    %91 = arith.mulf %90, %90 : vector<8x16xbf16>
    %92 = arith.mulf %90, %91 : vector<8x16xbf16>
    %cst_31 = arith.constant 4.467770e-02 : bf16
    %93 = vector.broadcast %cst_31 : bf16 to vector<8x16xbf16>
    %94 = arith.mulf %93, %92 : vector<8x16xbf16>
    %95 = arith.addf %90, %94 : vector<8x16xbf16>
    %cst_32 = arith.constant 7.968750e-01 : bf16
    %96 = vector.broadcast %cst_32 : bf16 to vector<8x16xbf16>
    %97 = arith.mulf %96, %95 : vector<8x16xbf16>
    %98 = math.tanh %97 : vector<8x16xbf16>
    %cst_33 = arith.constant 1.000000e+00 : bf16
    %99 = vector.broadcast %cst_33 : bf16 to vector<8x16xbf16>
    %100 = arith.addf %99, %98 : vector<8x16xbf16>
    %cst_34 = arith.constant 5.000000e-01 : bf16
    %101 = vector.broadcast %cst_34 : bf16 to vector<8x16xbf16>
    %102 = arith.mulf %101, %100 : vector<8x16xbf16>
    %103 = arith.mulf %90, %102 : vector<8x16xbf16>
    %c0_35 = arith.constant 0 : index
    %c0_36 = arith.constant 0 : index
    %104 = vector.load %arg5[%c0_35, %c0_36] : memref<16x32xbf16, #tpu.memory_space<vmem>>, vector<16x32xbf16>
    %cst_37 = arith.constant dense<0.000000e+00> : vector<8x32xf32>
    %105 = tpu.matmul %103, %104, %cst_37 {dimension_numbers = #tpu.dot_dimension_numbers<[1], [0], [0], [1], [0, 0, 1, 1], [], []>} : vector<8x16xbf16>, vector<16x32xbf16>, vector<8x32xf32> -> vector<8x32xf32>
    %c0_38 = arith.constant 0 : index
    %c0_39 = arith.constant 0 : index
    %106 = vector.load %arg8[%c0_38, %c0_39] : memref<1x32xf32, #tpu.memory_space<vmem>>, vector<1x32xf32>
    %107 = vector.broadcast %106 : vector<1x32xf32> to vector<8x32xf32>
    %108 = arith.addf %105, %107 : vector<8x32xf32>
    %c0_40 = arith.constant 0 : index
    %c0_41 = arith.constant 0 : index
    %109 = vector.load %arg10[%c0_40, %c0_41] : memref<8x32xf32, #tpu.memory_space<vmem>>, vector<8x32xf32>
    tpu.vector_store %arg10[%c0_40, %c0_41], %108 {strides = array<i32>} : memref<8x32xf32, #tpu.memory_space<vmem>>, vector<8x32xf32>,
    return
  }
  func.func @transform_0(%arg0: i32) -> (i32, i32) {
    %c0_i32 = arith.constant 0 : i32
    %c0_i32_0 = arith.constant 0 : i32
    return %arg0, %c0_i32 : i32, i32
  }
  func.func @transform_1(%arg0: i32) -> (i32, i32) {
    %c0_i32 = arith.constant 0 : i32
    %c0_i32_0 = arith.constant 0 : i32
    %c0_i32_1 = arith.constant 0 : i32
    return %c0_i32, %c0_i32_0 : i32, i32
  }
  func.func @transform_2(%arg0: i32) -> (i32, i32) {
    %c0_i32 = arith.constant 0 : i32
    %c0_i32_0 = arith.constant 0 : i32
    %c0_i32_1 = arith.constant 0 : i32
    return %c0_i32, %c0_i32_0 : i32, i32
  }
  func.func @transform_3(%arg0: i32) -> (i32, i32) {
    %c0_i32 = arith.constant 0 : i32
    %c0_i32_0 = arith.constant 0 : i32
    %c0_i32_1 = arith.constant 0 : i32
    return %c0_i32, %c0_i32_0 : i32, i32
  }
  func.func @transform_4(%arg0: i32) -> (i32, i32) {
    %c0_i32 = arith.constant 0 : i32
    %c0_i32_0 = arith.constant 0 : i32
    %c0_i32_1 = arith.constant 0 : i32
    return %c0_i32, %c0_i32_0 : i32, i32
  }
  func.func @transform_5(%arg0: i32) -> (i32, i32) {
    %c0_i32 = arith.constant 0 : i32
    %c0_i32_0 = arith.constant 0 : i32
    %c0_i32_1 = arith.constant 0 : i32
    return %c0_i32, %c0_i32_0 : i32, i32
  }
  func.func @transform_6(%arg0: i32) -> (i32, i32) {
    %c0_i32 = arith.constant 0 : i32
    %c0_i32_0 = arith.constant 0 : i32
    %c0_i32_1 = arith.constant 0 : i32
    return %c0_i32, %c0_i32_0 : i32, i32
  }
  func.func @transform_7(%arg0: i32) -> (i32, i32) {
    %c0_i32 = arith.constant 0 : i32
    %c0_i32_0 = arith.constant 0 : i32
    %c0_i32_1 = arith.constant 0 : i32
    return %c0_i32, %c0_i32_0 : i32, i32
  }
  func.func @transform_8(%arg0: i32) -> (i32, i32) {
    %c0_i32 = arith.constant 0 : i32
    %c0_i32_0 = arith.constant 0 : i32
    return %arg0, %c0_i32 : i32, i32
  }
  func.func @transform_9(%arg0: i32) -> (i32, i32) {
    %c0_i32 = arith.constant 0 : i32
    %c0_i32_0 = arith.constant 0 : i32
    return %arg0, %c0_i32 : i32, i32
  }
}

</mosaic_0001>

<llo_original>
// kernel: tpu_custom_call.1
$region0: #{tpu_custom_call.1}
  #allocation0 [shape = 'u32[]', space=smem, size = 0x4, offset = 0x4, fixed_abs, tag = 'smem constant byte address 0x4 - core index']
  #allocation1 [shape = 'u32[144,128]{1,0:T(1,128)}', space=vmem, size = 0x12000, scoped, tag = 'internal scratch']
  %s0 = inlined_call_operand.vmem [shape: f32[8,32], index: 0, kind: input, shape index: {}]
  %s1 = inlined_call_operand.vmem [shape: bf16[32,16], index: 1, kind: input, shape index: {}]
  %s2 = inlined_call_operand.vmem [shape: bf16[16,8], index: 2, kind: input, shape index: {}]
  %s3 = inlined_call_operand.vmem [shape: bf16[8,16], index: 3, kind: input, shape index: {}]
  %s4 = inlined_call_operand.vmem [shape: bf16[16,32], index: 4, kind: input, shape index: {}]
  %s5 = inlined_call_operand.vmem [shape: f32[6,16], index: 5, kind: input, shape index: {}]
  %s6 = inlined_call_operand.vmem [shape: f32[1,8], index: 6, kind: input, shape index: {}]
  %s7 = inlined_call_operand.vmem [shape: f32[1,32], index: 7, kind: input, shape index: {}]
  %s8 = inlined_call_operand.hbm [shape: f32[8,8], index: 8, kind: output, shape index: {0}]
  %s9 = inlined_call_operand.hbm [shape: f32[8,32], index: 9, kind: output, shape index: {1}]
  %10 = xla_tuple %s8, %s9
  %s11 = sld [smem:[#allocation0]]
  $region50: #{tpu_custom_call.1} parent=0
    _
  %s13 = ssub.s32 1, %s11
  %s14 = scalar_select 0, %s13, %s11
  $region1: #{tpu_custom_call.1} parent=0
    #allocation2 [shape = 'u8[4096]{0}', space=vmem, size = 0x1000, scoped, tag = 'output window, operand 0, single buffered']
    #allocation3 [shape = 's32[1]{0}', space=sflag, size = 0x4, scoped, tag = 'scoped memory for tpu_custom_call.1']
    #allocation4 [shape = 'u8[4096]{0}', space=vmem, size = 0x1000, scoped, tag = 'output window, operand 1, single buffered']
    #allocation5 [shape = 's32[1]{0}', space=sflag, size = 0x4, scoped, tag = 'scoped memory for tpu_custom_call.1']
    %15 = vsyncpa [#allocation3], 0
    %16 = vsyncpa [#allocation5], 0
    // Predicated region
    $region2: #{tpu_custom_call.1} parent=1 // pred_check
      _
    $region3: #{tpu_custom_call.1} parent=1 // pred_check_branch
      %18 = sbr.rel (0) target = $region5
    $region4: #{tpu_custom_call.1} parent=1 // pred_region
      _
    $region5: #{tpu_custom_call.1} parent=1 // pred_fallthru
      _
    // Predicated region
    $region6: #{tpu_custom_call.1} parent=1 // pred_check
      _
    $region7: #{tpu_custom_call.1} parent=1 // pred_check_branch
      %20 = sbr.rel (0) target = $region9
    $region8: #{tpu_custom_call.1} parent=1 // pred_region
      _
    $region9: #{tpu_custom_call.1} parent=1 // pred_fallthru
      _
    // Predicated region
    $region10: #{tpu_custom_call.1} parent=1 // pred_check
      _
    $region11: #{tpu_custom_call.1} parent=1 // pred_check_branch
      %22 = sbr.rel (0) target = $region13
    $region12: #{tpu_custom_call.1} parent=1 // pred_region
      _
    $region13: #{tpu_custom_call.1} parent=1 // pred_fallthru
      _
    // Predicated region
    $region14: #{tpu_custom_call.1} parent=1 // pred_check
      _
    $region15: #{tpu_custom_call.1} parent=1 // pred_check_branch
      %24 = sbr.rel (0) target = $region17
    $region16: #{tpu_custom_call.1} parent=1 // pred_region
      _
    $region17: #{tpu_custom_call.1} parent=1 // pred_fallthru
      _
    // Predicated region
    $region18: #{tpu_custom_call.1} parent=1 // pred_check
      _
    $region19: #{tpu_custom_call.1} parent=1 // pred_check_branch
      %26 = sbr.rel (0) target = $region21
    $region20: #{tpu_custom_call.1} parent=1 // pred_region
      _
    $region21: #{tpu_custom_call.1} parent=1 // pred_fallthru
      _
    // Predicated region
    $region22: #{tpu_custom_call.1} parent=1 // pred_check
      _
    $region23: #{tpu_custom_call.1} parent=1 // pred_check_branch
      %28 = sbr.rel (0) target = $region25
    $region24: #{tpu_custom_call.1} parent=1 // pred_region
      _
    $region25: #{tpu_custom_call.1} parent=1 // pred_fallthru
      _
    // Predicated region
    $region26: #{tpu_custom_call.1} parent=1 // pred_check
      _
    $region27: #{tpu_custom_call.1} parent=1 // pred_check_branch
      %30 = sbr.rel (0) target = $region29
    $region28: #{tpu_custom_call.1} parent=1 // pred_region
      _
    $region29: #{tpu_custom_call.1} parent=1 // pred_fallthru
      _
    // Predicated region
    $region30: #{tpu_custom_call.1} parent=1 // pred_check
      _
    $region31: #{tpu_custom_call.1} parent=1 // pred_check_branch
      %32 = sbr.rel (0) target = $region33
    $region32: #{tpu_custom_call.1} parent=1 // pred_region
      _
    $region33: #{tpu_custom_call.1} parent=1 // pred_fallthru
      _
    %v38 = vld [vmem:[%s5] sm:$0x3f]
    %v39 = vld [vmem:[%s0] sm:$0xff]
    %v40 = vpack.c.bf16 %v39, %v39
    %v41 = vld [vmem:[%s1] sm:$0xf]
    %v42 = vld [vmem:[%s1 + $0x4] sm:$0xf]
    %v43 = vld [vmem:[%s1 + $0x8] sm:$0xf]
    %v44 = vld [vmem:[%s1 + $0xc] sm:$0xf]
    %v45 = vlaneseq
    %v46 = vshrl.u32 %v45, 7
    %v47 = vsub.s32 0, %v46
    %v48 = vrot.slane %v38, %v47
    %v53 = vunpack.c.l.b16 %v41
    %v54 = vunpack.c.l.b16 %v42
    %v55 = vunpack.c.l.b16 %v43
    %v56 = vunpack.c.l.b16 %v44
    %v57 = vpack.c.b16 %v54, %v53
    %v58 = vpack.c.b16 %v56, %v55
    %vm61 = vcmask 261120
    %v63 = vsel %vm61, %v40, 0
    %65 = vmatprep.subr.bf16.mxu0 0
    %66 = vmatpush1.bf16.msra.mxu0 0
    %67 = vmatprep.subr.bf16.mxu0 0
    %68 = vmatpush1.bf16.msra.mxu0 0
    %69 = vmatprep.subr.bf16.mxu0 0
    %70 = vmatpush1.bf16.msra.mxu0 0
    %71 = vmatprep.subr.bf16.mxu0 0
    %72 = vmatpush1.bf16.msra.mxu0 0
    %73 = vmatprep.subr.bf16.mxu0 0
    %74 = vmatpush1.bf16.msra.mxu0 0
    %75 = vmatprep.subr.bf16.mxu0 0
    %76 = vmatpush1.bf16.msra.mxu0 0
    %77 = vmatprep.subr.bf16.mxu0 0
    %78 = vmatpush1.bf16.msra.mxu0 %v58
    %79 = vmatprep.subr.bf16.mxu0 0
    %80 = vmatpush1.bf16.msra.mxu0 %v57
    %81 = vmatprep.subr.bf16.mxu0 0
    %82 = vmatpush2.bf16.msra.mxu0 0
    %83 = vmatprep.subr.bf16.mxu0 0
    %84 = vmatpush2.bf16.msra.mxu0 0
    %85 = vmatprep.subr.bf16.mxu0 0
    %86 = vmatpush2.bf16.msra.mxu0 0
    %87 = vmatprep.subr.bf16.mxu0 0
    %88 = vmatpush2.bf16.msra.mxu0 0
    %89 = vmatprep.subr.bf16.mxu0 0
    %90 = vmatpush2.bf16.msra.mxu0 0
    %91 = vmatprep.subr.bf16.mxu0 0
    %92 = vmatpush2.bf16.msra.mxu0 0
    %93 = vmatprep.subr.bf16.mxu0 0
    %94 = vmatpush2.bf16.msra.mxu0 0
    %95 = vmatprep.subr.bf16.mxu0 0
    %96 = vmatpush2.bf16.msra.mxu0 0
    %97 = vmatprep.mubr.bf16.mxu0 0
    %98 = vmatmul.mubr.bf16.gmra.mxu0 %v63
    %v99 = vpop.f32.mrf.mxu0
    %v100 = vadd.f32 %v48, %v99
    %v101 = vpop.f32.mrf.mxu0
    %v102 = vpop.f32.mrf.mxu0
    %v103 = vpop.f32.mrf.mxu0
    %104 = vdwg.mxu0
    %vm105 = vcmask 130048
    %v106 = vsel %vm105, %v100, 0.0
    %107 = vadd.xlane.f32.xlu0 %v106
    %v108 = vpop.xlane.xlu0 %107
    %v109 = vmul.f32 %v108, 0.0625
    %v110 = vmul.f32 %v100, %v100
    %v111 = vsel %vm105, %v110, 0.0
    %112 = vadd.xlane.f32.xlu0 %v111
    %v113 = vpop.xlane.xlu0 %112
    %v114 = vmul.f32 %v113, 0.0625
    %v115 = vmul.f32 %v109, %v109
    %v116 = vsub.f32 %v114, %v115
    %v117 = vmax.f32 %v116, 0.0
    %v118 = vsub.f32 %v100, %v109
    %v119 = vadd.f32 %v117, 1e-05
    %v120 = vrsqrt.pop %v119
    %v121 = vmul.f32 %v118, %v120
    %v122 = vpack.c.bf16 %v121, %v121
    %v123 = vpack.c.bf16 %v38, %v38
    %v125 = vshrl.u32 %v123, 16
    %v126 = vpack.i.b16 %v125, %v125
    %v128 = vlaneseq
    %v129 = vshrl.u32 %v128, 7
    %v130 = vsub.s32 0, %v129
    %v131 = vrot.slane %v126, %v130
    %v132 = vmul.bf16 %v122, %v131
    %v133 = vpack.i.b16 %v123, %v123
    %v135 = vlaneseq
    %v136 = vshrl.u32 %v135, 7
    %v137 = vsub.s32 1, %v136
    %v138 = vrot.slane %v133, %v137
    %v139 = vadd.bf16 %v132, %v138
    %v140 = vmul.bf16 %v139, %v139
    %v141 = vmul.bf16 %v139, %v140
    %v142 = vmul.bf16 %v141, 1027030327
    %v143 = vadd.bf16 %v139, %v142
    %v144 = vmul.bf16 %v143, 1061961548
    %v145 = vtanh.bf16.pop %v144
    %v146 = vadd.bf16 %v145, 1065369472
    %v147 = vmul.bf16 %v146, 1056980736
    %v148 = vmul.bf16 %v139, %v147
    %v149 = vld [vmem:[%s2] sm:$0xf]
    %v150 = vld [vmem:[%s2 + $0x4] sm:$0xf]
    %v151 = vld [vmem:[%s6] sm:$0x1]
    %v153 = vlaneseq
    %v154 = vshrl.u32 %v153, 7
    %v155 = vsub.s32 0, %v154
    %v156 = vrot.slane %v151, %v155
    %v160 = vunpack.c.l.b16 %v149
    %v161 = vunpack.c.l.b16 %v150
    %v162 = vpack.c.b16 %v161, %v160
    %v165 = vsel %vm105, %v148, 0
    %167 = vmatprep.subr.bf16.mxu0 0
    %168 = vmatpush1.bf16.msra.mxu0 0
    %169 = vmatprep.subr.bf16.mxu0 0
    %170 = vmatpush1.bf16.msra.mxu0 0
    %171 = vmatprep.subr.bf16.mxu0 0
    %172 = vmatpush1.bf16.msra.mxu0 0
    %173 = vmatprep.subr.bf16.mxu0 0
    %174 = vmatpush1.bf16.msra.mxu0 0
    %175 = vmatprep.subr.bf16.mxu0 0
    %176 = vmatpush1.bf16.msra.mxu0 0
    %177 = vmatprep.subr.bf16.mxu0 0
    %178 = vmatpush1.bf16.msra.mxu0 0
    %179 = vmatprep.subr.bf16.mxu0 0
    %180 = vmatpush1.bf16.msra.mxu0 0
    %181 = vmatprep.subr.bf16.mxu0 0
    %182 = vmatpush1.bf16.msra.mxu0 %v162
    %183 = vmatprep.subr.bf16.mxu0 0
    %184 = vmatpush2.bf16.msra.mxu0 0
    %185 = vmatprep.subr.bf16.mxu0 0
    %186 = vmatpush2.bf16.msra.mxu0 0
    %187 = vmatprep.subr.bf16.mxu0 0
    %188 = vmatpush2.bf16.msra.mxu0 0
    %189 = vmatprep.subr.bf16.mxu0 0
    %190 = vmatpush2.bf16.msra.mxu0 0
    %191 = vmatprep.subr.bf16.mxu0 0
    %192 = vmatpush2.bf16.msra.mxu0 0
    %193 = vmatprep.subr.bf16.mxu0 0
    %194 = vmatpush2.bf16.msra.mxu0 0
    %195 = vmatprep.subr.bf16.mxu0 0
    %196 = vmatpush2.bf16.msra.mxu0 0
    %197 = vmatprep.subr.bf16.mxu0 0
    %198 = vmatpush2.bf16.msra.mxu0 0
    %199 = vmatprep.mubr.bf16.mxu0 0
    %200 = vmatmul.mubr.bf16.gmra.mxu0 %v165
    %v201 = vpop.f32.mrf.mxu0
    %v202 = vadd.f32 %v156, %v201
    %v203 = vpop.f32.mrf.mxu0
    %v204 = vpop.f32.mrf.mxu0
    %v205 = vpop.f32.mrf.mxu0
    %206 = vdwg.mxu0
    %vm207 = vcmask 64512
    %208 = vst.msk [vmem:[#allocation2] sm:$0xff] %vm207, %v202
    %v209 = vpack.c.bf16 %v202, %v202
    %v210 = vld [vmem:[%s3] sm:$0xf]
    %v211 = vlaneseq
    %v212 = vshrl.u32 %v211, 7
    %v213 = vsub.s32 3, %v212
    %v214 = vrot.slane %v38, %v213
    %v216 = vsel %vm207, %v209, 0
    %vm218 = vcmask 1043456
    %v220 = vsel %vm218, %v210, 0
    %222 = vmatprep.subr.bf16.mxu0 0
    %223 = vmatpush1.bf16.msra.mxu0 0
    %224 = vmatprep.subr.bf16.mxu0 0
    %225 = vmatpush1.bf16.msra.mxu0 0
    %226 = vmatprep.subr.bf16.mxu0 0
    %227 = vmatpush1.bf16.msra.mxu0 0
    %228 = vmatprep.subr.bf16.mxu0 0
    %229 = vmatpush1.bf16.msra.mxu0 0
    %230 = vmatprep.subr.bf16.mxu0 0
    %231 = vmatpush1.bf16.msra.mxu0 0
    %232 = vmatprep.subr.bf16.mxu0 0
    %233 = vmatpush1.bf16.msra.mxu0 0
    %234 = vmatprep.subr.bf16.mxu0 0
    %235 = vmatpush1.bf16.msra.mxu0 0
    %236 = vmatprep.subr.bf16.mxu0 0
    %237 = vmatpush1.bf16.msra.mxu0 %v220
    %238 = vmatprep.subr.bf16.mxu0 0
    %239 = vmatpush2.bf16.msra.mxu0 0
    %240 = vmatprep.subr.bf16.mxu0 0
    %241 = vmatpush2.bf16.msra.mxu0 0
    %242 = vmatprep.subr.bf16.mxu0 0
    %243 = vmatpush2.bf16.msra.mxu0 0
    %244 = vmatprep.subr.bf16.mxu0 0
    %245 = vmatpush2.bf16.msra.mxu0 0
    %246 = vmatprep.subr.bf16.mxu0 0
    %247 = vmatpush2.bf16.msra.mxu0 0
    %248 = vmatprep.subr.bf16.mxu0 0
    %249 = vmatpush2.bf16.msra.mxu0 0
    %250 = vmatprep.subr.bf16.mxu0 0
    %251 = vmatpush2.bf16.msra.mxu0 0
    %252 = vmatprep.subr.bf16.mxu0 0
    %253 = vmatpush2.bf16.msra.mxu0 0
    %254 = vmatprep.mubr.bf16.mxu0 0
    %255 = vmatmul.mubr.bf16.gmra.mxu0 %v216
    %v256 = vpop.f32.mrf.mxu0
    %v257 = vadd.f32 %v214, %v256
    %v258 = vpop.f32.mrf.mxu0
    %v259 = vpop.f32.mrf.mxu0
    %v260 = vpop.f32.mrf.mxu0
    %261 = vdwg.mxu0
    %v262 = vsel %vm105, %v257, 0.0
    %263 = vadd.xlane.f32.xlu0 %v262
    %v264 = vpop.xlane.xlu0 %263
    %v265 = vmul.f32 %v264, 0.0625
    %v266 = vmul.f32 %v257, %v257
    %v267 = vsel %vm105, %v266, 0.0
    %268 = vadd.xlane.f32.xlu0 %v267
    %v269 = vpop.xlane.xlu0 %268
    %v270 = vmul.f32 %v269, 0.0625
    %v271 = vmul.f32 %v265, %v265
    %v272 = vsub.f32 %v270, %v271
    %v273 = vmax.f32 %v272, 0.0
    %v274 = vsub.f32 %v257, %v265
    %v275 = vadd.f32 %v273, 1e-05
    %v276 = vrsqrt.pop %v275
    %v277 = vmul.f32 %v274, %v276
    %v278 = vpack.c.bf16 %v277, %v277
    %v279 = vlaneseq
    %v280 = vshrl.u32 %v279, 7
    %v281 = vsub.s32 2, %v280
    %v282 = vrot.slane %v133, %v281
    %v283 = vmul.bf16 %v278, %v282
    %v284 = vlaneseq
    %v285 = vshrl.u32 %v284, 7
    %v286 = vsub.s32 2, %v285
    %v287 = vrot.slane %v126, %v286
    %v288 = vadd.bf16 %v283, %v287
    %v289 = vmul.bf16 %v288, %v288
    %v290 = vmul.bf16 %v288, %v289
    %v291 = vmul.bf16 %v290, 1027030327
    %v292 = vadd.bf16 %v288, %v291
    %v293 = vmul.bf16 %v292, 1061961548
    %v294 = vtanh.bf16.pop %v293
    %v295 = vadd.bf16 %v294, 1065369472
    %v296 = vmul.bf16 %v295, 1056980736
    %v297 = vmul.bf16 %v288, %v296
    %v298 = vld [vmem:[%s4] sm:$0xf]
    %v299 = vld [vmem:[%s4 + $0x4] sm:$0xf]
    %v300 = vld [vmem:[%s7] sm:$0x1]
    %v302 = vlaneseq
    %v303 = vshrl.u32 %v302, 7
    %v304 = vsub.s32 0, %v303
    %v305 = vrot.slane %v300, %v304
    %v309 = vunpack.c.l.b16 %v298
    %v310 = vunpack.c.l.b16 %v299
    %v311 = vpack.c.b16 %v310, %v309
    %v314 = vsel %vm105, %v297, 0
    %316 = vmatprep.subr.bf16.mxu0 0
    %317 = vmatpush1.bf16.msra.mxu0 0
    %318 = vmatprep.subr.bf16.mxu0 0
    %319 = vmatpush1.bf16.msra.mxu0 0
    %320 = vmatprep.subr.bf16.mxu0 0
    %321 = vmatpush1.bf16.msra.mxu0 0
    %322 = vmatprep.subr.bf16.mxu0 0
    %323 = vmatpush1.bf16.msra.mxu0 0
    %324 = vmatprep.subr.bf16.mxu0 0
    %325 = vmatpush1.bf16.msra.mxu0 0
    %326 = vmatprep.subr.bf16.mxu0 0
    %327 = vmatpush1.bf16.msra.mxu0 0
    %328 = vmatprep.subr.bf16.mxu0 0
    %329 = vmatpush1.bf16.msra.mxu0 0
    %330 = vmatprep.subr.bf16.mxu0 0
    %331 = vmatpush1.bf16.msra.mxu0 %v311
    %332 = vmatprep.subr.bf16.mxu0 0
    %333 = vmatpush2.bf16.msra.mxu0 0
    %334 = vmatprep.subr.bf16.mxu0 0
    %335 = vmatpush2.bf16.msra.mxu0 0
    %336 = vmatprep.subr.bf16.mxu0 0
    %337 = vmatpush2.bf16.msra.mxu0 0
    %338 = vmatprep.subr.bf16.mxu0 0
    %339 = vmatpush2.bf16.msra.mxu0 0
    %340 = vmatprep.subr.bf16.mxu0 0
    %341 = vmatpush2.bf16.msra.mxu0 0
    %342 = vmatprep.subr.bf16.mxu0 0
    %343 = vmatpush2.bf16.msra.mxu0 0
    %344 = vmatprep.subr.bf16.mxu0 0
    %345 = vmatpush2.bf16.msra.mxu0 0
    %346 = vmatprep.subr.bf16.mxu0 0
    %347 = vmatpush2.bf16.msra.mxu0 0
    %348 = vmatprep.mubr.bf16.mxu0 0
    %349 = vmatmul.mubr.bf16.gmra.mxu0 %v314
    %v350 = vpop.f32.mrf.mxu0
    %v351 = vadd.f32 %v305, %v350
    %v352 = vpop.f32.mrf.mxu0
    %v353 = vpop.f32.mrf.mxu0
    %v354 = vpop.f32.mrf.mxu0
    %355 = vdwg.mxu0
    %356 = vst.msk [vmem:[#allocation4] sm:$0xff] %vm61, %v351
    // Predicated region
    $region34: #{tpu_custom_call.1} parent=1 // pred_check
      _
    $region35: #{tpu_custom_call.1} parent=1 // pred_check_branch
      %358 = sbr.rel (0) target = $region37
    $region36: #{tpu_custom_call.1} parent=1 // pred_region
      %s360 = ssub.s32 128, 128
      %361 = vsyncadd [#allocation3], %s360
      %s363 = sshll.u32 [#allocation2], 4
      %s364 = int_to_ptr.vmem [resolvable:$true] %s363
      %366 = dma.vmem_to_hbm [thread:$0]  %s364, 128, %s8, [#allocation3]
    $region37: #{tpu_custom_call.1} parent=1 // pred_fallthru
      _
    // Predicated region
    $region38: #{tpu_custom_call.1} parent=1 // pred_check
      _
    $region39: #{tpu_custom_call.1} parent=1 // pred_check_branch
      %368 = sbr.rel (0) target = $region41
    $region40: #{tpu_custom_call.1} parent=1 // pred_region
      %s370 = ssub.s32 128, 128
      %371 = vsyncadd [#allocation5], %s370
      %s373 = sshll.u32 [#allocation4], 4
      %s374 = int_to_ptr.vmem [resolvable:$true] %s373
      %376 = dma.vmem_to_hbm [thread:$0]  %s374, 128, %s9, [#allocation5]
    $region41: #{tpu_custom_call.1} parent=1 // pred_fallthru
      _
    // Predicated region
    $region42: #{tpu_custom_call.1} parent=1 // pred_check
      _
    $region43: #{tpu_custom_call.1} parent=1 // pred_check_branch
      %378 = sbr.rel (0) target = $region45
    $region44: #{tpu_custom_call.1} parent=1 // pred_region
      %379 = dma.done [#allocation3], 128
    $region45: #{tpu_custom_call.1} parent=1 // pred_fallthru
      _
    // Predicated region
    $region46: #{tpu_custom_call.1} parent=1 // pred_check
      _
    $region47: #{tpu_custom_call.1} parent=1 // pred_check_branch
      %381 = sbr.rel (0) target = $region49
    $region48: #{tpu_custom_call.1} parent=1 // pred_region
      %382 = dma.done [#allocation5], 128
    $region49: #{tpu_custom_call.1} parent=1 // pred_fallthru
      _
    %383 = vsyncpa [#allocation3], 1
    %384 = vsyncpa [#allocation5], 1

// kernel: tpu_custom_call.1
$region0: #{tpu_custom_call.1}
  #allocation0 [shape = 'u32[]', space=smem, size = 0x4, offset = 0x4, fixed_abs, tag = 'smem constant byte address 0x4 - core index']
  #allocation1 [shape = 'u32[144,128]{1,0:T(1,128)}', space=vmem, size = 0x12000, scoped, tag = 'internal scratch']
  %s0 = inlined_call_operand.vmem [shape: f32[8,32], index: 0, kind: input, shape index: {}]
  %s1 = inlined_call_operand.vmem [shape: bf16[32,16], index: 1, kind: input, shape index: {}]
  %s2 = inlined_call_operand.vmem [shape: bf16[16,8], index: 2, kind: input, shape index: {}]
  %s3 = inlined_call_operand.vmem [shape: bf16[8,16], index: 3, kind: input, shape index: {}]
  %s4 = inlined_call_operand.vmem [shape: bf16[16,32], index: 4, kind: input, shape index: {}]
  %s5 = inlined_call_operand.vmem [shape: f32[6,16], index: 5, kind: input, shape index: {}]
  %s6 = inlined_call_operand.vmem [shape: f32[1,8], index: 6, kind: input, shape index: {}]
  %s7 = inlined_call_operand.vmem [shape: f32[1,32], index: 7, kind: input, shape index: {}]
  %s8 = inlined_call_operand.hbm [shape: f32[8,8], index: 8, kind: output, shape index: {0}]
  %s9 = inlined_call_operand.hbm [shape: f32[8,32], index: 9, kind: output, shape index: {1}]
  %10 = xla_tuple %s8, %s9
  %s11 = sld [smem:[#allocation0]]
  $region50: #{tpu_custom_call.1} parent=0
    _
  %s13 = ssub.s32 1, %s11
  %s14 = scalar_select 0, %s13, %s11
  $region1: #{tpu_custom_call.1} parent=0
    #allocation2 [shape = 'u8[4096]{0}', space=vmem, size = 0x1000, scoped, tag = 'output window, operand 0, single buffered']
    #allocation3 [shape = 's32[1]{0}', space=sflag, size = 0x4, scoped, tag = 'scoped memory for tpu_custom_call.1']
    #allocation4 [shape = 'u8[4096]{0}', space=vmem, size = 0x1000, scoped, tag = 'output window, operand 1, single buffered']
    #allocation5 [shape = 's32[1]{0}', space=sflag, size = 0x4, scoped, tag = 'scoped memory for tpu_custom_call.1']
    %15 = vsyncpa [#allocation3], 0
    %16 = vsyncpa [#allocation5], 0
    // Predicated region
    $region2: #{tpu_custom_call.1} parent=1 // pred_check
      _
    $region3: #{tpu_custom_call.1} parent=1 // pred_check_branch
      %18 = sbr.rel (0) target = $region5
    $region4: #{tpu_custom_call.1} parent=1 // pred_region
      _
    $region5: #{tpu_custom_call.1} parent=1 // pred_fallthru
      _
    // Predicated region
    $region6: #{tpu_custom_call.1} parent=1 // pred_check
      _
    $region7: #{tpu_custom_call.1} parent=1 // pred_check_branch
      %20 = sbr.rel (0) target = $region9
    $region8: #{tpu_custom_call.1} parent=1 // pred_region
      _
    $region9: #{tpu_custom_call.1} parent=1 // pred_fallthru
      _
    // Predicated region
    $region10: #{tpu_custom_call.1} parent=1 // pred_check
      _
    $region11: #{tpu_custom_call.1} parent=1 // pred_check_branch
      %22 = sbr.rel (0) target = $region13
    $region12: #{tpu_custom_call.1} parent=1 // pred_region
      _
    $region13: #{tpu_custom_call.1} parent=1 // pred_fallthru
      _
    // Predicated region
    $region14: #{tpu_custom_call.1} parent=1 // pred_check
      _
    $region15: #{tpu_custom_call.1} parent=1 // pred_check_branch
      %24 = sbr.rel (0) target = $region17
    $region16: #{tpu_custom_call.1} parent=1 // pred_region
      _
    $region17: #{tpu_custom_call.1} parent=1 // pred_fallthru
      _
    // Predicated region
    $region18: #{tpu_custom_call.1} parent=1 // pred_check
      _
    $region19: #{tpu_custom_call.1} parent=1 // pred_check_branch
      %26 = sbr.rel (0) target = $region21
    $region20: #{tpu_custom_call.1} parent=1 // pred_region
      _
    $region21: #{tpu_custom_call.1} parent=1 // pred_fallthru
      _
    // Predicated region
    $region22: #{tpu_custom_call.1} parent=1 // pred_check
      _
    $region23: #{tpu_custom_call.1} parent=1 // pred_check_branch
      %28 = sbr.rel (0) target = $region25
    $region24: #{tpu_custom_call.1} parent=1 // pred_region
      _
    $region25: #{tpu_custom_call.1} parent=1 // pred_fallthru
      _
    // Predicated region
    $region26: #{tpu_custom_call.1} parent=1 // pred_check
      _
    $region27: #{tpu_custom_call.1} parent=1 // pred_check_branch
      %30 = sbr.rel (0) target = $region29
    $region28: #{tpu_custom_call.1} parent=1 // pred_region
      _
    $region29: #{tpu_custom_call.1} parent=1 // pred_fallthru
      _
    // Predicated region
    $region30: #{tpu_custom_call.1} parent=1 // pred_check
      _
    $region31: #{tpu_custom_call.1} parent=1 // pred_check_branch
      %32 = sbr.rel (0) target = $region33
    $region32: #{tpu_custom_call.1} parent=1 // pred_region
      _
    $region33: #{tpu_custom_call.1} parent=1 // pred_fallthru
      _
    %v38 = vld [vmem:[%s5] sm:$0x3f]
    %v39 = vld [vmem:[%s0] sm:$0xff]
    %v40 = vpack.c.bf16 %v39, %v39
    %v41 = vld [vmem:[%s1] sm:$0xf]
    %v42 = vld [vmem:[%s1 + $0x4] sm:$0xf]
    %v43 = vld [vmem:[%s1 + $0x8] sm:$0xf]
    %v44 = vld [vmem:[%s1 + $0xc] sm:$0xf]
    %v45 = vlaneseq
    %v46 = vshrl.u32 %v45, 7
    %v47 = vsub.s32 0, %v46
    %v48 = vrot.slane %v38, %v47
    %v53 = vunpack.c.l.b16 %v41
    %v54 = vunpack.c.l.b16 %v42
    %v55 = vunpack.c.l.b16 %v43
    %v56 = vunpack.c.l.b16 %v44
    %v57 = vpack.c.b16 %v54, %v53
    %v58 = vpack.c.b16 %v56, %v55
    %vm61 = vcmask 261120
    %v63 = vsel %vm61, %v40, 0
    %65 = vmatprep.subr.bf16.mxu0 0
    %66 = vmatpush1.bf16.msra.mxu0 0
    %67 = vmatprep.subr.bf16.mxu0 0
    %68 = vmatpush1.bf16.msra.mxu0 0
    %69 = vmatprep.subr.bf16.mxu0 0
    %70 = vmatpush1.bf16.msra.mxu0 0
    %71 = vmatprep.subr.bf16.mxu0 0
    %72 = vmatpush1.bf16.msra.mxu0 0
    %73 = vmatprep.subr.bf16.mxu0 0
    %74 = vmatpush1.bf16.msra.mxu0 0
    %75 = vmatprep.subr.bf16.mxu0 0
    %76 = vmatpush1.bf16.msra.mxu0 0
    %77 = vmatprep.subr.bf16.mxu0 0
    %78 = vmatpush1.bf16.msra.mxu0 %v58
    %79 = vmatprep.subr.bf16.mxu0 0
    %80 = vmatpush1.bf16.msra.mxu0 %v57
    %81 = vmatprep.subr.bf16.mxu0 0
    %82 = vmatpush2.bf16.msra.mxu0 0
    %83 = vmatprep.subr.bf16.mxu0 0
    %84 = vmatpush2.bf16.msra.mxu0 0
    %85 = vmatprep.subr.bf16.mxu0 0
    %86 = vmatpush2.bf16.msra.mxu0 0
    %87 = vmatprep.subr.bf16.mxu0 0
    %88 = vmatpush2.bf16.msra.mxu0 0
    %89 = vmatprep.subr.bf16.mxu0 0
    %90 = vmatpush2.bf16.msra.mxu0 0
    %91 = vmatprep.subr.bf16.mxu0 0
    %92 = vmatpush2.bf16.msra.mxu0 0
    %93 = vmatprep.subr.bf16.mxu0 0
    %94 = vmatpush2.bf16.msra.mxu0 0
    %95 = vmatprep.subr.bf16.mxu0 0
    %96 = vmatpush2.bf16.msra.mxu0 0
    %97 = vmatprep.mubr.bf16.mxu0 0
    %98 = vmatmul.mubr.bf16.gmra.mxu0 %v63
    %v99 = vpop.f32.mrf.mxu0
    %v100 = vadd.f32 %v48, %v99
    %v101 = vpop.f32.mrf.mxu0
    %v102 = vpop.f32.mrf.mxu0
    %v103 = vpop.f32.mrf.mxu0
    %104 = vdwg.mxu0
    %vm105 = vcmask 130048
    %v106 = vsel %vm105, %v100, 0.0
    %107 = vadd.xlane.f32.xlu0 %v106
    %v108 = vpop.xlane.xlu0 %107
    %v109 = vmul.f32 %v108, 0.0625
    %v110 = vmul.f32 %v100, %v100
    %v111 = vsel %vm105, %v110, 0.0
    %112 = vadd.xlane.f32.xlu0 %v111
    %v113 = vpop.xlane.xlu0 %112
    %v114 = vmul.f32 %v113, 0.0625
    %v115 = vmul.f32 %v109, %v109
    %v116 = vsub.f32 %v114, %v115
    %v117 = vmax.f32 %v116, 0.0
    %v118 = vsub.f32 %v100, %v109
    %v119 = vadd.f32 %v117, 1e-05
    %v120 = vrsqrt.pop %v119
    %v121 = vmul.f32 %v118, %v120
    %v122 = vpack.c.bf16 %v121, %v121
    %v123 = vpack.c.bf16 %v38, %v38
    %v125 = vshrl.u32 %v123, 16
    %v126 = vpack.i.b16 %v125, %v125
    %v128 = vlaneseq
    %v129 = vshrl.u32 %v128, 7
    %v130 = vsub.s32 0, %v129
    %v131 = vrot.slane %v126, %v130
    %v132 = vmul.bf16 %v122, %v131
    %v133 = vpack.i.b16 %v123, %v123
    %v135 = vlaneseq
    %v136 = vshrl.u32 %v135, 7
    %v137 = vsub.s32 1, %v136
    %v138 = vrot.slane %v133, %v137
    %v139 = vadd.bf16 %v132, %v138
    %v140 = vmul.bf16 %v139, %v139
    %v141 = vmul.bf16 %v139, %v140
    %v142 = vmul.bf16 %v141, 1027030327
    %v143 = vadd.bf16 %v139, %v142
    %v144 = vmul.bf16 %v143, 1061961548
    %v145 = vtanh.bf16.pop %v144
    %v146 = vadd.bf16 %v145, 1065369472
    %v147 = vmul.bf16 %v146, 1056980736
    %v148 = vmul.bf16 %v139, %v147
    %v149 = vld [vmem:[%s2] sm:$0xf]
    %v150 = vld [vmem:[%s2 + $0x4] sm:$0xf]
    %v151 = vld [vmem:[%s6] sm:$0x1]
    %v153 = vlaneseq
    %v154 = vshrl.u32 %v153, 7
    %v155 = vsub.s32 0, %v154
    %v156 = vrot.slane %v151, %v155
    %v160 = vunpack.c.l.b16 %v149
    %v161 = vunpack.c.l.b16 %v150
    %v162 = vpack.c.b16 %v161, %v160
    %v165 = vsel %vm105, %v148, 0
    %167 = vmatprep.subr.bf16.mxu0 0
    %168 = vmatpush1.bf16.msra.mxu0 0
    %169 = vmatprep.subr.bf16.mxu0 0
    %170 = vmatpush1.bf16.msra.mxu0 0
    %171 = vmatprep.subr.bf16.mxu0 0
    %172 = vmatpush1.bf16.msra.mxu0 0
    %173 = vmatprep.subr.bf16.mxu0 0
    %174 = vmatpush1.bf16.msra.mxu0 0
    %175 = vmatprep.subr.bf16.mxu0 0
    %176 = vmatpush1.bf16.msra.mxu0 0
    %177 = vmatprep.subr.bf16.mxu0 0
    %178 = vmatpush1.bf16.msra.mxu0 0
    %179 = vmatprep.subr.bf16.mxu0 0
    %180 = vmatpush1.bf16.msra.mxu0 0
    %181 = vmatprep.subr.bf16.mxu0 0
    %182 = vmatpush1.bf16.msra.mxu0 %v162
    %183 = vmatprep.subr.bf16.mxu0 0
    %184 = vmatpush2.bf16.msra.mxu0 0
    %185 = vmatprep.subr.bf16.mxu0 0
    %186 = vmatpush2.bf16.msra.mxu0 0
    %187 = vmatprep.subr.bf16.mxu0 0
    %188 = vmatpush2.bf16.msra.mxu0 0
    %189 = vmatprep.subr.bf16.mxu0 0
    %190 = vmatpush2.bf16.msra.mxu0 0
    %191 = vmatprep.subr.bf16.mxu0 0
    %192 = vmatpush2.bf16.msra.mxu0 0
    %193 = vmatprep.subr.bf16.mxu0 0
    %194 = vmatpush2.bf16.msra.mxu0 0
    %195 = vmatprep.subr.bf16.mxu0 0
    %196 = vmatpush2.bf16.msra.mxu0 0
    %197 = vmatprep.subr.bf16.mxu0 0
    %198 = vmatpush2.bf16.msra.mxu0 0
    %199 = vmatprep.mubr.bf16.mxu0 0
    %200 = vmatmul.mubr.bf16.gmra.mxu0 %v165
    %v201 = vpop.f32.mrf.mxu0
    %v202 = vadd.f32 %v156, %v201
    %v203 = vpop.f32.mrf.mxu0
    %v204 = vpop.f32.mrf.mxu0
    %v205 = vpop.f32.mrf.mxu0
    %206 = vdwg.mxu0
    %vm207 = vcmask 64512
    %208 = vst.msk [vmem:[#allocation2] sm:$0xff] %vm207, %v202
    %v209 = vpack.c.bf16 %v202, %v202
    %v210 = vld [vmem:[%s3] sm:$0xf]
    %v211 = vlaneseq
    %v212 = vshrl.u32 %v211, 7
    %v213 = vsub.s32 3, %v212
    %v214 = vrot.slane %v38, %v213
    %v216 = vsel %vm207, %v209, 0
    %vm218 = vcmask 1043456
    %v220 = vsel %vm218, %v210, 0
    %222 = vmatprep.subr.bf16.mxu0 0
    %223 = vmatpush1.bf16.msra.mxu0 0
    %224 = vmatprep.subr.bf16.mxu0 0
    %225 = vmatpush1.bf16.msra.mxu0 0
    %226 = vmatprep.subr.bf16.mxu0 0
    %227 = vmatpush1.bf16.msra.mxu0 0
    %228 = vmatprep.subr.bf16.mxu0 0
    %229 = vmatpush1.bf16.msra.mxu0 0
    %230 = vmatprep.subr.bf16.mxu0 0
    %231 = vmatpush1.bf16.msra.mxu0 0
    %232 = vmatprep.subr.bf16.mxu0 0
    %233 = vmatpush1.bf16.msra.mxu0 0
    %234 = vmatprep.subr.bf16.mxu0 0
    %235 = vmatpush1.bf16.msra.mxu0 0
    %236 = vmatprep.subr.bf16.mxu0 0
    %237 = vmatpush1.bf16.msra.mxu0 %v220
    %238 = vmatprep.subr.bf16.mxu0 0
    %239 = vmatpush2.bf16.msra.mxu0 0
    %240 = vmatprep.subr.bf16.mxu0 0
    %241 = vmatpush2.bf16.msra.mxu0 0
    %242 = vmatprep.subr.bf16.mxu0 0
    %243 = vmatpush2.bf16.msra.mxu0 0
    %244 = vmatprep.subr.bf16.mxu0 0
    %245 = vmatpush2.bf16.msra.mxu0 0
    %246 = vmatprep.subr.bf16.mxu0 0
    %247 = vmatpush2.bf16.msra.mxu0 0
    %248 = vmatprep.subr.bf16.mxu0 0
    %249 = vmatpush2.bf16.msra.mxu0 0
    %250 = vmatprep.subr.bf16.mxu0 0
    %251 = vmatpush2.bf16.msra.mxu0 0
    %252 = vmatprep.subr.bf16.mxu0 0
    %253 = vmatpush2.bf16.msra.mxu0 0
    %254 = vmatprep.mubr.bf16.mxu0 0
    %255 = vmatmul.mubr.bf16.gmra.mxu0 %v216
    %v256 = vpop.f32.mrf.mxu0
    %v257 = vadd.f32 %v214, %v256
    %v258 = vpop.f32.mrf.mxu0
    %v259 = vpop.f32.mrf.mxu0
    %v260 = vpop.f32.mrf.mxu0
    %261 = vdwg.mxu0
    %v262 = vsel %vm105, %v257, 0.0
    %263 = vadd.xlane.f32.xlu0 %v262
    %v264 = vpop.xlane.xlu0 %263
    %v265 = vmul.f32 %v264, 0.0625
    %v266 = vmul.f32 %v257, %v257
    %v267 = vsel %vm105, %v266, 0.0
    %268 = vadd.xlane.f32.xlu0 %v267
    %v269 = vpop.xlane.xlu0 %268
    %v270 = vmul.f32 %v269, 0.0625
    %v271 = vmul.f32 %v265, %v265
    %v272 = vsub.f32 %v270, %v271
    %v273 = vmax.f32 %v272, 0.0
    %v274 = vsub.f32 %v257, %v265
    %v275 = vadd.f32 %v273, 1e-05
    %v276 = vrsqrt.pop %v275
    %v277 = vmul.f32 %v274, %v276
    %v278 = vpack.c.bf16 %v277, %v277
    %v279 = vlaneseq
    %v280 = vshrl.u32 %v279, 7
    %v281 = vsub.s32 2, %v280
    %v282 = vrot.slane %v133, %v281
    %v283 = vmul.bf16 %v278, %v282
    %v284 = vlaneseq
    %v285 = vshrl.u32 %v284, 7
    %v286 = vsub.s32 2, %v285
    %v287 = vrot.slane %v126, %v286
    %v288 = vadd.bf16 %v283, %v287
    %v289 = vmul.bf16 %v288, %v288
    %v290 = vmul.bf16 %v288, %v289
    %v291 = vmul.bf16 %v290, 1027030327
    %v292 = vadd.bf16 %v288, %v291
    %v293 = vmul.bf16 %v292, 1061961548
    %v294 = vtanh.bf16.pop %v293
    %v295 = vadd.bf16 %v294, 1065369472
    %v296 = vmul.bf16 %v295, 1056980736
    %v297 = vmul.bf16 %v288, %v296
    %v298 = vld [vmem:[%s4] sm:$0xf]
    %v299 = vld [vmem:[%s4 + $0x4] sm:$0xf]
    %v300 = vld [vmem:[%s7] sm:$0x1]
    %v302 = vlaneseq
    %v303 = vshrl.u32 %v302, 7
    %v304 = vsub.s32 0, %v303
    %v305 = vrot.slane %v300, %v304
    %v309 = vunpack.c.l.b16 %v298
    %v310 = vunpack.c.l.b16 %v299
    %v311 = vpack.c.b16 %v310, %v309
    %v314 = vsel %vm105, %v297, 0
    %316 = vmatprep.subr.bf16.mxu0 0
    %317 = vmatpush1.bf16.msra.mxu0 0
    %318 = vmatprep.subr.bf16.mxu0 0
    %319 = vmatpush1.bf16.msra.mxu0 0
    %320 = vmatprep.subr.bf16.mxu0 0
    %321 = vmatpush1.bf16.msra.mxu0 0
    %322 = vmatprep.subr.bf16.mxu0 0
    %323 = vmatpush1.bf16.msra.mxu0 0
    %324 = vmatprep.subr.bf16.mxu0 0
    %325 = vmatpush1.bf16.msra.mxu0 0
    %326 = vmatprep.subr.bf16.mxu0 0
    %327 = vmatpush1.bf16.msra.mxu0 0
    %328 = vmatprep.subr.bf16.mxu0 0
    %329 = vmatpush1.bf16.msra.mxu0 0
    %330 = vmatprep.subr.bf16.mxu0 0
    %331 = vmatpush1.bf16.msra.mxu0 %v311
    %332 = vmatprep.subr.bf16.mxu0 0
    %333 = vmatpush2.bf16.msra.mxu0 0
    %334 = vmatprep.subr.bf16.mxu0 0
    %335 = vmatpush2.bf16.msra.mxu0 0
    %336 = vmatprep.subr.bf16.mxu0 0
    %337 = vmatpush2.bf16.msra.mxu0 0
    %338 = vmatprep.subr.bf16.mxu0 0
    %339 = vmatpush2.bf16.msra.mxu0 0
    %340 = vmatprep.subr.bf16.mxu0 0
    %341 = vmatpush2.bf16.msra.mxu0 0
    %342 = vmatprep.subr.bf16.mxu0 0
    %343 = vmatpush2.bf16.msra.mxu0 0
    %344 = vmatprep.subr.bf16.mxu0 0
    %345 = vmatpush2.bf16.msra.mxu0 0
    %346 = vmatprep.subr.bf16.mxu0 0
    %347 = vmatpush2.bf16.msra.mxu0 0
    %348 = vmatprep.mubr.bf16.mxu0 0
    %349 = vmatmul.mubr.bf16.gmra.mxu0 %v314
    %v350 = vpop.f32.mrf.mxu0
    %v351 = vadd.f32 %v305, %v350
    %v352 = vpop.f32.mrf.mxu0
    %v353 = vpop.f32.mrf.mxu0
    %v354 = vpop.f32.mrf.mxu0
    %355 = vdwg.mxu0
    %356 = vst.msk [vmem:[#allocation4] sm:$0xff] %vm61, %v351
    // Predicated region
    $region34: #{tpu_custom_call.1} parent=1 // pred_check
      _
    $region35: #{tpu_custom_call.1} parent=1 // pred_check_branch
      %358 = sbr.rel (0) target = $region37
    $region36: #{tpu_custom_call.1} parent=1 // pred_region
      %s360 = ssub.s32 128, 128
      %361 = vsyncadd [#allocation3], %s360
      %s363 = sshll.u32 [#allocation2], 4
      %s364 = int_to_ptr.vmem [resolvable:$true] %s363
      %366 = dma.vmem_to_hbm [thread:$0]  %s364, 128, %s8, [#allocation3]
    $region37: #{tpu_custom_call.1} parent=1 // pred_fallthru
      _
    // Predicated region
    $region38: #{tpu_custom_call.1} parent=1 // pred_check
      _
    $region39: #{tpu_custom_call.1} parent=1 // pred_check_branch
      %368 = sbr.rel (0) target = $region41
    $region40: #{tpu_custom_call.1} parent=1 // pred_region
      %s370 = ssub.s32 128, 128
      %371 = vsyncadd [#allocation5], %s370
      %s373 = sshll.u32 [#allocation4], 4
      %s374 = int_to_ptr.vmem [resolvable:$true] %s373
      %376 = dma.vmem_to_hbm [thread:$0]  %s374, 128, %s9, [#allocation5]
    $region41: #{tpu_custom_call.1} parent=1 // pred_fallthru
      _
    // Predicated region
    $region42: #{tpu_custom_call.1} parent=1 // pred_check
      _
    $region43: #{tpu_custom_call.1} parent=1 // pred_check_branch
      %378 = sbr.rel (0) target = $region45
    $region44: #{tpu_custom_call.1} parent=1 // pred_region
      %379 = dma.done [#allocation3], 128
    $region45: #{tpu_custom_call.1} parent=1 // pred_fallthru
      _
    // Predicated region
    $region46: #{tpu_custom_call.1} parent=1 // pred_check
      _
    $region47: #{tpu_custom_call.1} parent=1 // pred_check_branch
      %381 = sbr.rel (0) target = $region49
    $region48: #{tpu_custom_call.1} parent=1 // pred_region
      %382 = dma.done [#allocation5], 128
    $region49: #{tpu_custom_call.1} parent=1 // pred_fallthru
      _
    %383 = vsyncpa [#allocation3], 1
    %384 = vsyncpa [#allocation5], 1

</llo_original>
